<compile_context>
chip_gen: v7x
topology: tpu7x:2x2x1
jax: 0.10.0
libtpu: 0.0.40
codegen_flags: <defaults>
</compile_context>

<pallas_src>
import functools

import jax
import jax.numpy as jnp
from jax.experimental import pallas as pl
from jax.experimental.pallas import tpu as pltpu

LANE = 128
_SMALL_DIM = 8  # at/below this, use VPU/XLU paths instead of MXU matmuls

_ACTS = {
    "tanh": jnp.tanh,
    "relu": lambda v: jnp.maximum(v, 0.0),
    "sigmoid": jax.nn.sigmoid,
    "softplus": jax.nn.softplus,
}


def _round_up(n, m):
    return ((n + m - 1) // m) * m


# --------------------------------------------------------------------------
# Kernel: one batch tile of the full MLP forward pass, entirely in VMEM.
# --------------------------------------------------------------------------
def _mlp_kernel(x_ref, w_in_ref, b_in_ref, w_hid_ref, b_hid_ref,
                w_out_ref, b_out_ref, o_ref, *,
                num_hidden_layers, act_name, input_dim, output_dim):
    act = _ACTS[act_name]

    x = x_ref[...].astype(jnp.float32)        # (TB, din)   din NOT padded
    w_in = w_in_ref[...]                      # (din, Hp)   f32

    # ---- input layer -------------------------------------------------------
    if input_dim <= _SMALL_DIM:
        # Tiny PINN input dim: din VPU broadcast FMAs, no MXU, no lane-padded
        # x read from HBM.
        h = x[:, 0:1] * w_in[0:1, :]
        for d in range(1, input_dim):
            h = h + x[:, d:d + 1] * w_in[d:d + 1, :]
        h = h + b_in_ref[...]
    else:
        h = jnp.dot(x, w_in, preferred_element_type=jnp.float32) + b_in_ref[...]
    # NOTE: padded lanes of h are act(0) here, which is non-zero for
    # sigmoid/softplus; correctness relies on the next layer's zero-padded
    # weight ROWS, not on act(0) == 0.
    h = act(h)

    # ---- hidden layers (static unroll; L is a compile-time const) ----------
    for l in range(num_hidden_layers):
        hk = h.astype(w_hid_ref.dtype)        # bf16 at the MXU boundary if enabled
        h = jnp.dot(hk, w_hid_ref[l], preferred_element_type=jnp.float32)
        h = act(h + b_hid_ref[l])             # bias add / activation in f32

    # ---- output layer (no activation) ---------------------------------------
    w_out = w_out_ref[...]                    # (dout, Hp)  f32, PyTorch layout
    if output_dim <= _SMALL_DIM:
        # Narrow output: XLU row-reduction per output column; narrow HBM store.
        cols = [jnp.sum(h * w_out[d:d + 1, :], axis=-1, keepdims=True)
                for d in range(output_dim)]
        out = cols[0] if output_dim == 1 else jnp.concatenate(cols, axis=-1)
    else:
        out = jax.lax.dot_general(
            h, w_out, dimension_numbers=(((1,), (1,)), ((), ())),
            preferred_element_type=jnp.float32)
    o_ref[...] = (out + b_out_ref[...]).astype(o_ref.dtype)


# --------------------------------------------------------------------------
# One-time parameter preparation (hoisted out of the per-call hot path).
# --------------------------------------------------------------------------
def prepare_params(params, *, weight_dtype=jnp.float32):
    """Pad / transpose PyTorch-layout parameters once.

    params : dict with PyTorch nn.Linear layouts
             'w_in'  (hidden, input)     'b_in'  (hidden,)
             'w_hid' (L, hidden, hidden) 'b_hid' (L, hidden)
             'w_out' (output, hidden)    'b_out' (output,)
    weight_dtype : dtype for the hidden-layer weight stack (bf16 for the
                   v6e/v7x MXU fast path; accumulation stays f32).
    Returns (prepared_dict, num_hidden_layers).
    """
    f32 = jnp.float32
    hid, din = params["w_in"].shape
    L = params["w_hid"].shape[0]
    dout = params["w_out"].shape[0]
    hid_p = _round_up(hid, LANE)
    Lm = max(L, 1)

    # Input layer: (din, hid_p). Input-feature dim is NOT padded.
    w_in = jnp.zeros((din, hid_p), f32).at[:, :hid].set(params["w_in"].T.astype(f32))
    b_in = jnp.zeros((1, hid_p), f32).at[0, :hid].set(params["b_in"].astype(f32))

    w_hid = jnp.zeros((Lm, hid_p, hid_p), f32)
    b_hid = jnp.zeros((Lm, 1, hid_p), f32)
    if L > 0:
        w_hid = w_hid.at[:L, :hid, :hid].set(
            jnp.transpose(params["w_hid"], (0, 2, 1)).astype(f32))
        b_hid = b_hid.at[:L, 0, :hid].set(params["b_hid"].astype(f32))

    # Output layer kept in PyTorch layout (dout, hid_p); output dim NOT padded.
    w_out = jnp.zeros((dout, hid_p), f32).at[:, :hid].set(params["w_out"].astype(f32))
    b_out = jnp.zeros((1, dout), f32).at[0, :].set(params["b_out"].astype(f32))

    prepared = {
        "w_in": w_in, "b_in": b_in,
        "w_hid": w_hid.astype(weight_dtype), "b_hid": b_hid,
        "w_out": w_out, "b_out": b_out,
    }
    return prepared, L


def _choose_tile(batch, requested):
    """Batch tile: big (amortize ~0.35us/step overhead) but keep >=2 grid
    steps when the batch is small so v7x's two TensorCores both get work."""
    requested = max(8, _round_up(int(requested), 8))
    if batch > requested:
        return requested
    return max(8, _round_up((batch + 1) // 2, 8))


# --------------------------------------------------------------------------
# Forward pass (per-call hot path: pad batch -> pallas_call -> slice batch).
# --------------------------------------------------------------------------
def neural_net_forward(x, prepared, num_hidden_layers, *,
                       activation="tanh", tile_b=512):
    if activation not in _ACTS:
        raise ValueError(f"Unsupported activation function: {activation}")
    B, din = x.shape
    hid_p = prepared["w_in"].shape[1]
    dout = prepared["w_out"].shape[0]
    L = int(num_hidden_layers)
    Lm = max(L, 1)

    tb = _choose_tile(B, tile_b)
    Bp = _round_up(B, tb)
    grid = (Bp // tb,)

    f32 = jnp.float32
    x_p = x.astype(f32)
    if Bp != B:
        x_p = jnp.zeros((Bp, din), f32).at[:B].set(x_p)

    kernel = functools.partial(
        _mlp_kernel, num_hidden_layers=L, act_name=activation,
        input_dim=din, output_dim=dout)

    out_p = pl.pallas_call(
        kernel,
        out_shape=jax.ShapeDtypeStruct((Bp, dout), f32),
        grid_spec=pltpu.PrefetchScalarGridSpec(
            num_scalar_prefetch=0,
            grid=grid,
            in_specs=[
                pl.BlockSpec((tb, din), lambda i: (i, 0)),              # x (din unpadded)
                pl.BlockSpec((din, hid_p), lambda i: (0, 0)),           # w_in (resident)
                pl.BlockSpec((1, hid_p), lambda i: (0, 0)),             # b_in
                pl.BlockSpec((Lm, hid_p, hid_p), lambda i: (0, 0, 0)),  # w_hid stack
                pl.BlockSpec((Lm, 1, hid_p), lambda i: (0, 0, 0)),      # b_hid stack
                pl.BlockSpec((dout, hid_p), lambda i: (0, 0)),          # w_out
                pl.BlockSpec((1, dout), lambda i: (0, 0)),              # b_out
            ],
            out_specs=pl.BlockSpec((tb, dout), lambda i: (i, 0)),       # narrow writeback
        ),
        compiler_params=pltpu.CompilerParams(
            dimension_semantics=("parallel",)),
    )(x_p, prepared["w_in"], prepared["b_in"], prepared["w_hid"],
      prepared["b_hid"], prepared["w_out"], prepared["b_out"])

    return out_p[:B]


# --------------------------------------------------------------------------
# Deterministic parameter init (mimics PyTorch nn.Linear default: U(-k, k),
# k = 1/sqrt(fan_in)) and a pure-JAX reference for validation.
# --------------------------------------------------------------------------
def init_params(key, input_dim, hidden_dim, output_dim, num_hidden_layers):
    keys = jax.random.split(key, 2 * (num_hidden_layers + 2))

    def linear(kw, kb, fan_in, fan_out):
        bound = 1.0 / jnp.sqrt(fan_in)
        w = jax.random.uniform(kw, (fan_out, fan_in), jnp.float32, -bound, bound)
        b = jax.random.uniform(kb, (fan_out,), jnp.float32, -bound, bound)
        return w, b

    w_in, b_in = linear(keys[0], keys[1], input_dim, hidden_dim)
    w_hid, b_hid = [], []
    for l in range(num_hidden_layers):
        w, b = linear(keys[2 + 2 * l], keys[3 + 2 * l], hidden_dim, hidden_dim)
        w_hid.append(w)
        b_hid.append(b)
    w_out, b_out = linear(keys[-2], keys[-1], hidden_dim, output_dim)

    return {
        "w_in": w_in, "b_in": b_in,
        "w_hid": jnp.stack(w_hid) if num_hidden_layers
                 else jnp.zeros((0, hidden_dim, hidden_dim), jnp.float32),
        "b_hid": jnp.stack(b_hid) if num_hidden_layers
                 else jnp.zeros((0, hidden_dim), jnp.float32),
        "w_out": w_out, "b_out": b_out,
    }


def reference_forward(x, params, activation="tanh"):
    acts = {"tanh": jnp.tanh, "relu": jax.nn.relu,
            "sigmoid": jax.nn.sigmoid, "softplus": jax.nn.softplus}
    act = acts[activation]
    h = act(x @ params["w_in"].T + params["b_in"])
    for l in range(params["w_hid"].shape[0]):
        h = act(h @ params["w_hid"][l].T + params["b_hid"][l])
    return h @ params["w_out"].T + params["b_out"]


# --------------------------------------------------------------------------
if __name__ == "__main__":
    # PINN-style shapes: (x, t) coordinates -> scalar PDE solution
    input_dim, hidden_dim, output_dim, num_hidden_layers = 2, 32, 1, 3
    batch = 256

    key = jax.random.PRNGKey(0)
    k_params, k_x = jax.random.split(key)
    params = init_params(k_params, input_dim, hidden_dim, output_dim, num_hidden_layers)
    x = jax.random.normal(k_x, (batch, input_dim), jnp.float32)

    # One-time parameter preparation (hoisted out of the hot path), then jit
    # the per-call glue around the pallas_call.
    prepped_f32, L = prepare_params(params)
    fwd = jax.jit(functools.partial(neural_net_forward, num_hidden_layers=L,
                                    activation="tanh", tile_b=512))

    out = jax.block_until_ready(fwd(x, prepped_f32))
    ref = reference_forward(x, params, activation="tanh")
    assert out.shape == (batch, output_dim), out.shape
    assert jnp.allclose(out, ref, atol=1e-5, rtol=1e-5), \
        float(jnp.max(jnp.abs(out - ref)))

    # Sigmoid check: verifies the non-zero padded-lane activations (act(0)=0.5)
    # are correctly absorbed by the zero-padded weight rows of the next layer.
    out_s = jax.block_until_ready(
        neural_net_forward(x, prepped_f32, L, activation="sigmoid"))
    ref_s = reference_forward(x, params, activation="sigmoid")
    assert jnp.allclose(out_s, ref_s, atol=1e-5, rtol=1e-5), \
        float(jnp.max(jnp.abs(out_s - ref_s)))

    # bf16 MXU operands / f32 accumulation (v6e / v7x fast path).
    prepped_bf16, _ = prepare_params(params, weight_dtype=jnp.bfloat16)
    out_b = jax.block_until_ready(
        neural_net_forward(x, prepped_bf16, L, activation="tanh"))
    assert out_b.shape == (batch, output_dim)
    assert float(jnp.max(jnp.abs(out_b - ref))) < 5e-2, \
        float(jnp.max(jnp.abs(out_b - ref)))

    print("KERNEL_OK")
</pallas_src>

<mosaic_0001>
module attributes {stable_mosaic.version = 11 : i64} {
  func.func @_mlp_kernel(%arg0: i32, %arg1: memref<128x2xf32, #tpu.memory_space<vmem>>, %arg2: memref<2x128xf32, #tpu.memory_space<vmem>>, %arg3: memref<1x128xf32, #tpu.memory_space<vmem>>, %arg4: memref<3x128x128xf32, #tpu.memory_space<vmem>>, %arg5: memref<3x1x128xf32, #tpu.memory_space<vmem>>, %arg6: memref<1x128xf32, #tpu.memory_space<vmem>>, %arg7: memref<1x1xf32, #tpu.memory_space<vmem>>, %arg8: memref<128x1xf32, #tpu.memory_space<vmem>>) attributes {dimension_semantics = [#tpu.dimension_semantics<parallel>], iteration_bounds = array<i64: 2>, scalar_prefetch = 0 : i64, scratch_operands = 0 : i64, tpu.core_type = #tpu.core_type<tc>, window_params = [{transform_indices = @transform_0, window_bounds = array<i64: 128, 2>}, {pipeline_mode = #tpu.pipeline_mode<synchronous>, transform_indices = @transform_1, window_bounds = array<i64: 2, 128>}, {pipeline_mode = #tpu.pipeline_mode<synchronous>, transform_indices = @transform_2, window_bounds = array<i64: 1, 128>}, {pipeline_mode = #tpu.pipeline_mode<synchronous>, transform_indices = @transform_3, window_bounds = array<i64: 3, 128, 128>}, {pipeline_mode = #tpu.pipeline_mode<synchronous>, transform_indices = @transform_4, window_bounds = array<i64: 3, 1, 128>}, {pipeline_mode = #tpu.pipeline_mode<synchronous>, transform_indices = @transform_5, window_bounds = array<i64: 1, 128>}, {pipeline_mode = #tpu.pipeline_mode<synchronous>, transform_indices = @transform_6, window_bounds = array<i64: 1, 1>}, {transform_indices = @transform_7, window_bounds = array<i64: 128, 1>}]} {
    %c0 = arith.constant 0 : index
    %c0_0 = arith.constant 0 : index
    %0 = vector.load %arg1[%c0, %c0_0] : memref<128x2xf32, #tpu.memory_space<vmem>>, vector<128x2xf32>
    %c0_1 = arith.constant 0 : index
    %c0_2 = arith.constant 0 : index
    %1 = vector.load %arg2[%c0_1, %c0_2] : memref<2x128xf32, #tpu.memory_space<vmem>>, vector<2x128xf32>
    %2 = vector.extract_strided_slice %0 {offsets = [0, 0], sizes = [128, 1], strides = [1, 1]} : vector<128x2xf32> to vector<128x1xf32>
    %3 = vector.extract_strided_slice %1 {offsets = [0, 0], sizes = [1, 128], strides = [1, 1]} : vector<2x128xf32> to vector<1x128xf32>
    %4 = vector.broadcast %2 : vector<128x1xf32> to vector<128x128xf32>
    %5 = vector.broadcast %3 : vector<1x128xf32> to vector<128x128xf32>
    %6 = arith.mulf %4, %5 : vector<128x128xf32>
    %7 = vector.extract_strided_slice %0 {offsets = [0, 1], sizes = [128, 1], strides = [1, 1]} : vector<128x2xf32> to vector<128x1xf32>
    %8 = vector.extract_strided_slice %1 {offsets = [1, 0], sizes = [1, 128], strides = [1, 1]} : vector<2x128xf32> to vector<1x128xf32>
    %9 = vector.broadcast %7 : vector<128x1xf32> to vector<128x128xf32>
    %10 = vector.broadcast %8 : vector<1x128xf32> to vector<128x128xf32>
    %11 = arith.mulf %9, %10 : vector<128x128xf32>
    %12 = arith.addf %6, %11 : vector<128x128xf32>
    %c0_3 = arith.constant 0 : index
    %c0_4 = arith.constant 0 : index
    %13 = vector.load %arg3[%c0_3, %c0_4] : memref<1x128xf32, #tpu.memory_space<vmem>>, vector<1x128xf32>
    %14 = vector.broadcast %13 : vector<1x128xf32> to vector<128x128xf32>
    %15 = arith.addf %12, %14 : vector<128x128xf32>
    %16 = math.tanh %15 : vector<128x128xf32>
    %c0_5 = arith.constant 0 : index
    %c0_6 = arith.constant 0 : index
    %c0_7 = arith.constant 0 : index
    %17 = vector.load %arg4[%c0_5, %c0_6, %c0_7] : memref<3x128x128xf32, #tpu.memory_space<vmem>>, vector<1x128x128xf32>
    %18 = vector.shape_cast %17 : vector<1x128x128xf32> to vector<128x128xf32>
    %cst = arith.constant dense<0.000000e+00> : vector<128x128xf32>
    %19 = tpu.matmul %16, %18, %cst {dimension_numbers = #tpu.dot_dimension_numbers<[1], [0], [0], [1], [0, 0, 1, 1], [], []>} : vector<128x128xf32>, vector<128x128xf32>, vector<128x128xf32> -> vector<128x128xf32>
    %c0_8 = arith.constant 0 : index
    %c0_9 = arith.constant 0 : index
    %c0_10 = arith.constant 0 : index
    %20 = vector.load %arg5[%c0_8, %c0_9, %c0_10] : memref<3x1x128xf32, #tpu.memory_space<vmem>>, vector<1x1x128xf32>
    %21 = vector.shape_cast %20 : vector<1x1x128xf32> to vector<1x128xf32>
    %22 = vector.broadcast %21 : vector<1x128xf32> to vector<128x128xf32>
    %23 = arith.addf %19, %22 : vector<128x128xf32>
    %24 = math.tanh %23 : vector<128x128xf32>
    %c1 = arith.constant 1 : index
    %c0_11 = arith.constant 0 : index
    %c0_12 = arith.constant 0 : index
    %25 = vector.load %arg4[%c1, %c0_11, %c0_12] : memref<3x128x128xf32, #tpu.memory_space<vmem>>, vector<1x128x128xf32>
    %26 = vector.shape_cast %25 : vector<1x128x128xf32> to vector<128x128xf32>
    %cst_13 = arith.constant dense<0.000000e+00> : vector<128x128xf32>
    %27 = tpu.matmul %24, %26, %cst_13 {dimension_numbers = #tpu.dot_dimension_numbers<[1], [0], [0], [1], [0, 0, 1, 1], [], []>} : vector<128x128xf32>, vector<128x128xf32>, vector<128x128xf32> -> vector<128x128xf32>
    %c1_14 = arith.constant 1 : index
    %c0_15 = arith.constant 0 : index
    %c0_16 = arith.constant 0 : index
    %28 = vector.load %arg5[%c1_14, %c0_15, %c0_16] : memref<3x1x128xf32, #tpu.memory_space<vmem>>, vector<1x1x128xf32>
    %29 = vector.shape_cast %28 : vector<1x1x128xf32> to vector<1x128xf32>
    %30 = vector.broadcast %29 : vector<1x128xf32> to vector<128x128xf32>
    %31 = arith.addf %27, %30 : vector<128x128xf32>
    %32 = math.tanh %31 : vector<128x128xf32>
    %c2 = arith.constant 2 : index
    %c0_17 = arith.constant 0 : index
    %c0_18 = arith.constant 0 : index
    %33 = vector.load %arg4[%c2, %c0_17, %c0_18] : memref<3x128x128xf32, #tpu.memory_space<vmem>>, vector<1x128x128xf32>
    %34 = vector.shape_cast %33 : vector<1x128x128xf32> to vector<128x128xf32>
    %cst_19 = arith.constant dense<0.000000e+00> : vector<128x128xf32>
    %35 = tpu.matmul %32, %34, %cst_19 {dimension_numbers = #tpu.dot_dimension_numbers<[1], [0], [0], [1], [0, 0, 1, 1], [], []>} : vector<128x128xf32>, vector<128x128xf32>, vector<128x128xf32> -> vector<128x128xf32>
    %c2_20 = arith.constant 2 : index
    %c0_21 = arith.constant 0 : index
    %c0_22 = arith.constant 0 : index
    %36 = vector.load %arg5[%c2_20, %c0_21, %c0_22] : memref<3x1x128xf32, #tpu.memory_space<vmem>>, vector<1x1x128xf32>
    %37 = vector.shape_cast %36 : vector<1x1x128xf32> to vector<1x128xf32>
    %38 = vector.broadcast %37 : vector<1x128xf32> to vector<128x128xf32>
    %39 = arith.addf %35, %38 : vector<128x128xf32>
    %40 = math.tanh %39 : vector<128x128xf32>
    %c0_23 = arith.constant 0 : index
    %c0_24 = arith.constant 0 : index
    %41 = vector.load %arg6[%c0_23, %c0_24] : memref<1x128xf32, #tpu.memory_space<vmem>>, vector<1x128xf32>
    %42 = vector.broadcast %41 : vector<1x128xf32> to vector<128x128xf32>
    %43 = arith.mulf %40, %42 : vector<128x128xf32>
    %cst_25 = arith.constant dense<0.000000e+00> : vector<128xf32>
    %44 = vector.multi_reduction <add>, %43, %cst_25 [1] : vector<128x128xf32> to vector<128xf32>
    %45 = vector.shape_cast %44 : vector<128xf32> to vector<128x1xf32>
    %c0_26 = arith.constant 0 : index
    %c0_27 = arith.constant 0 : index
    %46 = vector.load %arg7[%c0_26, %c0_27] : memref<1x1xf32, #tpu.memory_space<vmem>>, vector<1x1xf32>
    %47 = vector.broadcast %46 : vector<1x1xf32> to vector<128x1xf32>
    %48 = arith.addf %45, %47 : vector<128x1xf32>
    %c0_28 = arith.constant 0 : index
    %c0_29 = arith.constant 0 : index
    %49 = vector.load %arg8[%c0_28, %c0_29] : memref<128x1xf32, #tpu.memory_space<vmem>>, vector<128x1xf32>
    tpu.vector_store %arg8[%c0_28, %c0_29], %48 {strides = array<i32>} : memref<128x1xf32, #tpu.memory_space<vmem>>, vector<128x1xf32>,
    return
  }
  func.func @transform_0(%arg0: i32) -> (i32, i32) {
    %c0_i32 = arith.constant 0 : i32
    %c0_i32_0 = arith.constant 0 : i32
    return %arg0, %c0_i32 : i32, i32
  }
  func.func @transform_1(%arg0: i32) -> (i32, i32) {
    %c0_i32 = arith.constant 0 : i32
    %c0_i32_0 = arith.constant 0 : i32
    %c0_i32_1 = arith.constant 0 : i32
    return %c0_i32, %c0_i32_0 : i32, i32
  }
  func.func @transform_2(%arg0: i32) -> (i32, i32) {
    %c0_i32 = arith.constant 0 : i32
    %c0_i32_0 = arith.constant 0 : i32
    %c0_i32_1 = arith.constant 0 : i32
    return %c0_i32, %c0_i32_0 : i32, i32
  }
  func.func @transform_3(%arg0: i32) -> (i32, i32, i32) {
    %c0_i32 = arith.constant 0 : i32
    %c0_i32_0 = arith.constant 0 : i32
    %c0_i32_1 = arith.constant 0 : i32
    %c0_i32_2 = arith.constant 0 : i32
    return %c0_i32, %c0_i32_0, %c0_i32_1 : i32, i32, i32
  }
  func.func @transform_4(%arg0: i32) -> (i32, i32, i32) {
    %c0_i32 = arith.constant 0 : i32
    %c0_i32_0 = arith.constant 0 : i32
    %c0_i32_1 = arith.constant 0 : i32
    %c0_i32_2 = arith.constant 0 : i32
    return %c0_i32, %c0_i32_0, %c0_i32_1 : i32, i32, i32
  }
  func.func @transform_5(%arg0: i32) -> (i32, i32) {
    %c0_i32 = arith.constant 0 : i32
    %c0_i32_0 = arith.constant 0 : i32
    %c0_i32_1 = arith.constant 0 : i32
    return %c0_i32, %c0_i32_0 : i32, i32
  }
  func.func @transform_6(%arg0: i32) -> (i32, i32) {
    %c0_i32 = arith.constant 0 : i32
    %c0_i32_0 = arith.constant 0 : i32
    %c0_i32_1 = arith.constant 0 : i32
    return %c0_i32, %c0_i32_0 : i32, i32
  }
  func.func @transform_7(%arg0: i32) -> (i32, i32) {
    %c0_i32 = arith.constant 0 : i32
    %c0_i32_0 = arith.constant 0 : i32
    return %arg0, %c0_i32 : i32, i32
  }
}

</mosaic_0001>

<llo_original>
// kernel: neural_net_forward.1
$region0: #{neural_net_forward.1}
  #allocation0 [shape = 'u32[]', space=smem, size = 0x4, offset = 0x4, fixed_abs, tag = 'smem constant byte address 0x4 - core index']
  #allocation1 [shape = 'u32[144,128]{1,0:T(1,128)}', space=vmem, size = 0x12000, scoped, tag = 'internal scratch']
  #allocation2 [shape = 'f32[1,1]{1,0:T(1,128)S(1)}', space=vmem, size = 0x200, scoped, tag = 'scoped memory for neural_net_forward.1']
  %s0 = inlined_call_operand.vmem [shape: f32[256,2], index: 0, kind: input, shape index: {}]
  %s1 = inlined_call_operand.vmem [shape: f32[2,128], index: 1, kind: input, shape index: {}]
  %s2 = inlined_call_operand.vmem [shape: f32[1,128], index: 2, kind: input, shape index: {}]
  %s3 = inlined_call_operand.hbm [shape: f32[3,128,128], index: 3, kind: input, shape index: {}]
  %s4 = inlined_call_operand.vmem [shape: f32[3,1,128], index: 4, kind: input, shape index: {}]
  %s5 = inlined_call_operand.vmem [shape: f32[1,128], index: 5, kind: input, shape index: {}]
  %s6 = inlined_call_operand.<no memory space> [shape: f32[1,1], index: 6, kind: input, shape index: {}]
  %s7 = inlined_call_operand.vmem [shape: f32[256,1], index: 7, kind: output, shape index: {}]
  %s8 = sld [smem:[#allocation0]]
  $region65: #{neural_net_forward.1} parent=0
    _
  %s10 = ssub.s32 1, %s8
  %s11 = scalar_select 0, %s10, %s8
  %v12 = vstv %s6
  %13 = vst [vmem:[#allocation2] sm:$0x1] %v12
  $region1: #{neural_net_forward.1} parent=0
    #allocation3 [shape = 'u8[196608]{0}', space=vmem, size = 0x30000, scoped, tag = 'input window, operand 3, single buffered']
    #allocation4 [shape = 's32[2]{0}', space=sflag, size = 0x8, scoped, tag = 'scoped memory for neural_net_forward.1']
    %14 = vsyncpa [#allocation4], 0
    loop: start=0, step=1, limit=4
    $region2: #{neural_net_forward.1} parent=1 // loop_pre_header
      _
    $region3: #{neural_net_forward.1} parent=1 // loop_header
      %s16 = sphi 0, %s20
      %p17 = scmp.ge.s32.totalorder %s16, 4
      %s26 = sphi 0, %s28
      %s29 = sphi 0, %s26
      %s30 = sphi 0, %s29
      %s46 = sphi 0, %s30
      %s50 = sphi 0, %s50
      %s52 = sphi 0, %s50
      %s53 = sphi 0, %s52
      %s67 = sphi 0, %s53
      %s71 = sphi 0, %s71
      %s73 = sphi 0, %s71
      %s74 = sphi 0, %s73
      %s88 = sphi 0, %s74
      %s92 = sphi 0, %s92
      %s94 = sphi 0, %s92
      %s95 = sphi 0, %s94
      %s109 = sphi 0, %s95
      %s113 = sphi 0, %s113
      %s115 = sphi 0, %s113
      %s116 = sphi 0, %s115
      %s130 = sphi 0, %s116
      %s134 = sphi 0, %s134
      %s136 = sphi 0, %s134
      %s137 = sphi 0, %s136
      %s151 = sphi 0, %s137
      %s155 = sphi 0, %s155
      %s157 = sphi 0, %s155
      %s158 = sphi 0, %s157
      %s172 = sphi 0, %s158
      %s178 = sphi 0, %s180
      %s181 = sphi 0, %s178
      %s182 = sphi 0, %s181
      %s198 = sphi 0, %s182
    $region4: #{neural_net_forward.1} parent=1 // loop_header_branch
      %19 = sbr.rel (%p17) target = $region8
    $region5: #{neural_net_forward.1} parent=1 // loop_body
      %s21 = ssub.s32 %s16, 1
      %s22 = ssub.s32 %s16, 2
      %s23 = sadd.s32 %s16, 1
      %s24 = ssub.s32 %s16, %s23
      %p25 = scmp.eq.s32.totalorder %s24, 0
      %s27 = sadd.s32 %s26, 1
      %s28 = scalar_select %p25, %s26, %s27
      %p31 = pneg %p25
      %p32 = scmp.eq.s32.totalorder %s16, 1
      %p33 = por %p31, %p32
      %p34 = scmp.ne.s32.totalorder %s26, %s29
      %p35 = scmp.eq.s32.totalorder %s16, 0
      %p36 = por %p34, %p35
      %p37 = scmp.ne.s32.totalorder %s26, %s29
      %p38 = scmp.eq.s32.totalorder %s21, 1
      %p39 = por %p37, %p38
      %p40 = scmp.ne.s32.totalorder %s29, %s30
      %p41 = scmp.eq.s32.totalorder %s21, 0
      %p42 = por %p40, %p41
      %p43 = scmp.ne.s32.totalorder %s29, %s30
      %p44 = scmp.eq.s32.totalorder %s22, 1
      %p45 = por %p43, %p44
      %p47 = scmp.ne.s32.totalorder %s30, %s46
      %p48 = scmp.eq.s32.totalorder %s22, 0
      %p49 = por %p47, %p48
      %s51 = sadd.s32 %s50, 1
      %p54 = scmp.eq.s32.totalorder %s16, 1
      %p55 = scmp.ne.s32.totalorder %s50, %s52
      %p56 = scmp.eq.s32.totalorder %s16, 0
      %p57 = por %p55, %p56
      %p58 = scmp.ne.s32.totalorder %s50, %s52
      %p59 = scmp.eq.s32.totalorder %s21, 1
      %p60 = por %p58, %p59
      %p61 = scmp.ne.s32.totalorder %s52, %s53
      %p62 = scmp.eq.s32.totalorder %s21, 0
      %p63 = por %p61, %p62
      %p64 = scmp.ne.s32.totalorder %s52, %s53
      %p65 = scmp.eq.s32.totalorder %s22, 1
      %p66 = por %p64, %p65
      %p68 = scmp.ne.s32.totalorder %s53, %s67
      %p69 = scmp.eq.s32.totalorder %s22, 0
      %p70 = por %p68, %p69
      %s72 = sadd.s32 %s71, 1
      %p75 = scmp.eq.s32.totalorder %s16, 1
      %p76 = scmp.ne.s32.totalorder %s71, %s73
      %p77 = scmp.eq.s32.totalorder %s16, 0
      %p78 = por %p76, %p77
      %p79 = scmp.ne.s32.totalorder %s71, %s73
      %p80 = scmp.eq.s32.totalorder %s21, 1
      %p81 = por %p79, %p80
      %p82 = scmp.ne.s32.totalorder %s73, %s74
      %p83 = scmp.eq.s32.totalorder %s21, 0
      %p84 = por %p82, %p83
      %p85 = scmp.ne.s32.totalorder %s73, %s74
      %p86 = scmp.eq.s32.totalorder %s22, 1
      %p87 = por %p85, %p86
      %p89 = scmp.ne.s32.totalorder %s74, %s88
      %p90 = scmp.eq.s32.totalorder %s22, 0
      %p91 = por %p89, %p90
      %s93 = sadd.s32 %s92, 1
      %p96 = scmp.eq.s32.totalorder %s16, 1
      %p97 = scmp.ne.s32.totalorder %s92, %s94
      %p98 = scmp.eq.s32.totalorder %s16, 0
      %p99 = por %p97, %p98
      %p100 = scmp.ne.s32.totalorder %s92, %s94
      %p101 = scmp.eq.s32.totalorder %s21, 1
      %p102 = por %p100, %p101
      %p103 = scmp.ne.s32.totalorder %s94, %s95
      %p104 = scmp.eq.s32.totalorder %s21, 0
      %p105 = por %p103, %p104
      %p106 = scmp.ne.s32.totalorder %s94, %s95
      %p107 = scmp.eq.s32.totalorder %s22, 1
      %p108 = por %p106, %p107
      %p110 = scmp.ne.s32.totalorder %s95, %s109
      %p111 = scmp.eq.s32.totalorder %s22, 0
      %p112 = por %p110, %p111
      %s114 = sadd.s32 %s113, 1
      %p117 = scmp.eq.s32.totalorder %s16, 1
      %p118 = scmp.ne.s32.totalorder %s113, %s115
      %p119 = scmp.eq.s32.totalorder %s16, 0
      %p120 = por %p118, %p119
      %p121 = scmp.ne.s32.totalorder %s113, %s115
      %p122 = scmp.eq.s32.totalorder %s21, 1
      %p123 = por %p121, %p122
      %p124 = scmp.ne.s32.totalorder %s115, %s116
      %p125 = scmp.eq.s32.totalorder %s21, 0
      %p126 = por %p124, %p125
      %p127 = scmp.ne.s32.totalorder %s115, %s116
      %p128 = scmp.eq.s32.totalorder %s22, 1
      %p129 = por %p127, %p128
      %p131 = scmp.ne.s32.totalorder %s116, %s130
      %p132 = scmp.eq.s32.totalorder %s22, 0
      %p133 = por %p131, %p132
      %s135 = sadd.s32 %s134, 1
      %p138 = scmp.eq.s32.totalorder %s16, 1
      %p139 = scmp.ne.s32.totalorder %s134, %s136
      %p140 = scmp.eq.s32.totalorder %s16, 0
      %p141 = por %p139, %p140
      %p142 = scmp.ne.s32.totalorder %s134, %s136
      %p143 = scmp.eq.s32.totalorder %s21, 1
      %p144 = por %p142, %p143
      %p145 = scmp.ne.s32.totalorder %s136, %s137
      %p146 = scmp.eq.s32.totalorder %s21, 0
      %p147 = por %p145, %p146
      %p148 = scmp.ne.s32.totalorder %s136, %s137
      %p149 = scmp.eq.s32.totalorder %s22, 1
      %p150 = por %p148, %p149
      %p152 = scmp.ne.s32.totalorder %s137, %s151
      %p153 = scmp.eq.s32.totalorder %s22, 0
      %p154 = por %p152, %p153
      %s156 = sadd.s32 %s155, 1
      %p159 = scmp.eq.s32.totalorder %s16, 1
      %p160 = scmp.ne.s32.totalorder %s155, %s157
      %p161 = scmp.eq.s32.totalorder %s16, 0
      %p162 = por %p160, %p161
      %p163 = scmp.ne.s32.totalorder %s155, %s157
      %p164 = scmp.eq.s32.totalorder %s21, 1
      %p165 = por %p163, %p164
      %p166 = scmp.ne.s32.totalorder %s157, %s158
      %p167 = scmp.eq.s32.totalorder %s21, 0
      %p168 = por %p166, %p167
      %p169 = scmp.ne.s32.totalorder %s157, %s158
      %p170 = scmp.eq.s32.totalorder %s22, 1
      %p171 = por %p169, %p170
      %p173 = scmp.ne.s32.totalorder %s158, %s172
      %p174 = scmp.eq.s32.totalorder %s22, 0
      %p175 = por %p173, %p174
      %s176 = ssub.s32 %s16, %s23
      %p177 = scmp.eq.s32.totalorder %s176, 0
      %s179 = sadd.s32 %s178, 1
      %s180 = scalar_select %p177, %s178, %s179
      %p183 = pneg %p177
      %p184 = scmp.eq.s32.totalorder %s16, 1
      %p185 = por %p183, %p184
      %p186 = scmp.ne.s32.totalorder %s178, %s181
      %p187 = scmp.eq.s32.totalorder %s16, 0
      %p188 = por %p186, %p187
      %p189 = scmp.ne.s32.totalorder %s178, %s181
      %p190 = scmp.eq.s32.totalorder %s21, 1
      %p191 = por %p189, %p190
      %p192 = scmp.ne.s32.totalorder %s181, %s182
      %p193 = scmp.eq.s32.totalorder %s21, 0
      %p194 = por %p192, %p193
      %p195 = scmp.ne.s32.totalorder %s181, %s182
      %p196 = scmp.eq.s32.totalorder %s22, 1
      %p197 = por %p195, %p196
      %p199 = scmp.ne.s32.totalorder %s182, %s198
      %p200 = scmp.eq.s32.totalorder %s22, 0
      %p201 = por %p199, %p200
      %p202 = scmp.le.s32.totalorder 1, %s16
      %p203 = scmp.lt.s32.totalorder %s16, 3
      %p204 = pnand %p202, %p203
      %p205 = pneg %p204
      // Predicated region
      $region9: #{neural_net_forward.1} parent=5 // pred_check
        _
      $region10: #{neural_net_forward.1} parent=5 // pred_check_branch
        %207 = sbr.rel (%p204) target = $region12
      $region11: #{neural_net_forward.1} parent=5 // pred_region
        %s208 = ssub.s32 %s16, 1
        // Predicated region
        $region13: #{neural_net_forward.1} parent=11 // pred_check
          %p209 = pneg %p63
        $region14: #{neural_net_forward.1} parent=11 // pred_check_branch
          %211 = sbr.rel (%p209) target = $region16
        $region15: #{neural_net_forward.1} parent=11 // pred_region
          _
        $region16: #{neural_net_forward.1} parent=11 // pred_fallthru
          _
        // Predicated region
        $region17: #{neural_net_forward.1} parent=11 // pred_check
          %p212 = pneg %p84
        $region18: #{neural_net_forward.1} parent=11 // pred_check_branch
          %214 = sbr.rel (%p212) target = $region20
        $region19: #{neural_net_forward.1} parent=11 // pred_region
          _
        $region20: #{neural_net_forward.1} parent=11 // pred_fallthru
          _
        // Predicated region
        $region21: #{neural_net_forward.1} parent=11 // pred_check
          %p215 = pneg %p105
        $region22: #{neural_net_forward.1} parent=11 // pred_check_branch
          %217 = sbr.rel (%p215) target = $region24
        $region23: #{neural_net_forward.1} parent=11 // pred_region
          %s219 = ssub.s32 6144, 6144
          %220 = vsyncadd [#allocation4], %s219
          %s221 = sshll.u32 [#allocation3], 4
          %s222 = int_to_ptr.vmem [resolvable:$true] %s221
          %227 = dma.hbm_to_vmem [thread:$0]  %s3, 6144, %s222, [#allocation4], 128, 128, 8
        $region24: #{neural_net_forward.1} parent=11 // pred_fallthru
          _
        // Predicated region
        $region25: #{neural_net_forward.1} parent=11 // pred_check
          %p228 = pneg %p126
        $region26: #{neural_net_forward.1} parent=11 // pred_check_branch
          %230 = sbr.rel (%p228) target = $region28
        $region27: #{neural_net_forward.1} parent=11 // pred_region
          _
        $region28: #{neural_net_forward.1} parent=11 // pred_fallthru
          _
        // Predicated region
        $region29: #{neural_net_forward.1} parent=11 // pred_check
          %p231 = pneg %p147
        $region30: #{neural_net_forward.1} parent=11 // pred_check_branch
          %233 = sbr.rel (%p231) target = $region32
        $region31: #{neural_net_forward.1} parent=11 // pred_region
          _
        $region32: #{neural_net_forward.1} parent=11 // pred_fallthru
          _
        // Predicated region
        $region33: #{neural_net_forward.1} parent=11 // pred_check
          %p234 = pneg %p168
        $region34: #{neural_net_forward.1} parent=11 // pred_check_branch
          %236 = sbr.rel (%p234) target = $region36
        $region35: #{neural_net_forward.1} parent=11 // pred_region
          _
        $region36: #{neural_net_forward.1} parent=11 // pred_fallthru
          _
      $region12: #{neural_net_forward.1} parent=5 // pred_fallthru
        _
      %p237 = scmp.lt.s32.totalorder %s16, 2
      // Predicated region
      $region37: #{neural_net_forward.1} parent=5 // pred_check
        %p238 = pneg %p237
      $region38: #{neural_net_forward.1} parent=5 // pred_check_branch
        %240 = sbr.rel (%p238) target = $region40
      $region39: #{neural_net_forward.1} parent=5 // pred_region
        // Predicated region
        $region41: #{neural_net_forward.1} parent=39 // pred_check
          %p241 = pneg %p36
        $region42: #{neural_net_forward.1} parent=39 // pred_check_branch
          %243 = sbr.rel (%p241) target = $region44
        $region43: #{neural_net_forward.1} parent=39 // pred_region
          %s244 = smul.u32 16, %s16
          %p245 = scmp.lt.s32.totalorder %s244, 31
          %s246 = scalar_select %p245, %s244, 31
          %s247 = smul.addr %s246, 8
          %s248 = scalar_lea.vmem %s0, %s247
          %s249 = smul.u32 16, %s16
        $region44: #{neural_net_forward.1} parent=39 // pred_fallthru
          _
      $region40: #{neural_net_forward.1} parent=5 // pred_fallthru
        _
      %p250 = scmp.le.s32.totalorder 1, %s16
      %p251 = scmp.lt.s32.totalorder %s16, 3
      %p252 = pnand %p250, %p251
      %p253 = pneg %p252
      // Predicated region
      $region45: #{neural_net_forward.1} parent=5 // pred_check
        _
      $region46: #{neural_net_forward.1} parent=5 // pred_check_branch
        %255 = sbr.rel (%p252) target = $region48
      $region47: #{neural_net_forward.1} parent=5 // pred_region
        %s256 = ssub.s32 %s16, 1
        // Predicated region
        $region49: #{neural_net_forward.1} parent=47 // pred_check
          %p257 = pneg %p105
        $region50: #{neural_net_forward.1} parent=47 // pred_check_branch
          %259 = sbr.rel (%p257) target = $region52
        $region51: #{neural_net_forward.1} parent=47 // pred_region
          %260 = dma.done [#allocation4], 6144
        $region52: #{neural_net_forward.1} parent=47 // pred_fallthru
          _
        %s261 = smul.u32 16, %s21
        %p262 = scmp.lt.s32.totalorder %s261, 31
        %s263 = scalar_select %p262, %s261, 31
        %s264 = smul.addr %s263, 8
        %s265 = scalar_lea.vmem %s0, %s264
        %p266 = pneg %p42
        %p267 = pneg %p39
        %p268 = pneg %p63
        %p269 = pneg %p60
        %p270 = pneg %p84
        %p271 = pneg %p81
        %p272 = pneg %p105
        %p273 = pneg %p102
        %p274 = pneg %p126
        %p275 = pneg %p123
        %p276 = pneg %p147
        %p277 = pneg %p144
        %p278 = pneg %p168
        %p279 = pneg %p165
        %p280 = pneg %p194
        %p281 = pneg %p191
        %s282 = smul.u32 16, %s21
        %p283 = scmp.lt.s32.totalorder %s282, 31
        %s284 = scalar_select %p283, %s282, 31
        %s285 = smul.addr %s284, 8
        %s286 = scalar_lea.vmem %s7, %s285
        %s287 = smul.u32 16, %s21
        %p288 = scmp.lt.s32.totalorder %s287, 31
        %s289 = scalar_select %p288, %s287, 31
        %s290 = smul.addr %s289, 8
        %s291 = scalar_lea.vmem %s0, %s290
        %s292 = smul.u32 16, %s21
        %s293 = smul.u32 16, %s21
        %p294 = scmp.lt.s32.totalorder %s293, 31
        %s295 = scalar_select %p294, %s293, 31
        %s296 = smul.addr %s295, 8
        %s297 = scalar_lea.vmem %s7, %s296
        %s298 = smul.u32 16, %s21
        %v299 = vld [vmem:[%s291] sm:$0xff]
        %v300 = vld [vmem:[%s291 + $0x8] sm:$0xff]
        %v301 = vld [vmem:[%s291 + $0x10] sm:$0xff]
        %v302 = vld [vmem:[%s291 + $0x18] sm:$0xff]
        %v303 = vld [vmem:[%s291 + $0x20] sm:$0xff]
        %v304 = vld [vmem:[%s291 + $0x28] sm:$0xff]
        %v305 = vld [vmem:[%s291 + $0x30] sm:$0xff]
        %v306 = vld [vmem:[%s291 + $0x38] sm:$0xff]
        %v307 = vld [vmem:[%s291 + $0x40] sm:$0xff]
        %v308 = vld [vmem:[%s291 + $0x48] sm:$0xff]
        %v309 = vld [vmem:[%s291 + $0x50] sm:$0xff]
        %v310 = vld [vmem:[%s291 + $0x58] sm:$0xff]
        %v311 = vld [vmem:[%s291 + $0x60] sm:$0xff]
        %v312 = vld [vmem:[%s291 + $0x68] sm:$0xff]
        %v313 = vld [vmem:[%s291 + $0x70] sm:$0xff]
        %v314 = vld [vmem:[%s291 + $0x78] sm:$0xff]
        %v315 = vld [vmem:[%s1] sm:$0x3]
        %317 = vset.pattern.permute.xlu0 0
        %318 = vperm.xlu0 %317, %v299
        %v319 = vpop.permute.xlu0 %318
        %322 = vset.pattern.permute.xlu0 0
        %323 = vperm.xlu0 %322, %v300
        %v324 = vpop.permute.xlu0 %323
        %327 = vset.pattern.permute.xlu0 0
        %328 = vperm.xlu0 %327, %v301
        %v329 = vpop.permute.xlu0 %328
        %332 = vset.pattern.permute.xlu0 0
        %333 = vperm.xlu0 %332, %v302
        %v334 = vpop.permute.xlu0 %333
        %337 = vset.pattern.permute.xlu0 0
        %338 = vperm.xlu0 %337, %v303
        %v339 = vpop.permute.xlu0 %338
        %342 = vset.pattern.permute.xlu0 0
        %343 = vperm.xlu0 %342, %v304
        %v344 = vpop.permute.xlu0 %343
        %347 = vset.pattern.permute.xlu0 0
        %348 = vperm.xlu0 %347, %v305
        %v349 = vpop.permute.xlu0 %348
        %352 = vset.pattern.permute.xlu0 0
        %353 = vperm.xlu0 %352, %v306
        %v354 = vpop.permute.xlu0 %353
        %357 = vset.pattern.permute.xlu0 0
        %358 = vperm.xlu0 %357, %v307
        %v359 = vpop.permute.xlu0 %358
        %362 = vset.pattern.permute.xlu0 0
        %363 = vperm.xlu0 %362, %v308
        %v364 = vpop.permute.xlu0 %363
        %367 = vset.pattern.permute.xlu0 0
        %368 = vperm.xlu0 %367, %v309
        %v369 = vpop.permute.xlu0 %368
        %372 = vset.pattern.permute.xlu0 0
        %373 = vperm.xlu0 %372, %v310
        %v374 = vpop.permute.xlu0 %373
        %377 = vset.pattern.permute.xlu0 0
        %378 = vperm.xlu0 %377, %v311
        %v379 = vpop.permute.xlu0 %378
        %382 = vset.pattern.permute.xlu0 0
        %383 = vperm.xlu0 %382, %v312
        %v384 = vpop.permute.xlu0 %383
        %387 = vset.pattern.permute.xlu0 0
        %388 = vperm.xlu0 %387, %v313
        %v389 = vpop.permute.xlu0 %388
        %392 = vset.pattern.permute.xlu0 0
        %393 = vperm.xlu0 %392, %v314
        %v394 = vpop.permute.xlu0 %393
        %v396 = vlaneseq
        %v397 = vshrl.u32 %v396, 7
        %v398 = vsub.s32 0, %v397
        %v399 = vrot.slane %v315, %v398
        %v400 = vmul.f32 %v319, %v399
        %v401 = vmul.f32 %v324, %v399
        %v402 = vmul.f32 %v329, %v399
        %v403 = vmul.f32 %v334, %v399
        %v404 = vmul.f32 %v339, %v399
        %v405 = vmul.f32 %v344, %v399
        %v406 = vmul.f32 %v349, %v399
        %v407 = vmul.f32 %v354, %v399
        %v408 = vmul.f32 %v359, %v399
        %v409 = vmul.f32 %v364, %v399
        %v410 = vmul.f32 %v369, %v399
        %v411 = vmul.f32 %v374, %v399
        %v412 = vmul.f32 %v379, %v399
        %v413 = vmul.f32 %v384, %v399
        %v414 = vmul.f32 %v389, %v399
        %v415 = vmul.f32 %v394, %v399
        %416 = vset.pattern.permute.xlu0 1
        %417 = vperm.xlu0 %416, %v299
        %v418 = vpop.permute.xlu0 %417
        %420 = vset.pattern.permute.xlu0 1
        %421 = vperm.xlu0 %420, %v300
        %v422 = vpop.permute.xlu0 %421
        %424 = vset.pattern.permute.xlu0 1
        %425 = vperm.xlu0 %424, %v301
        %v426 = vpop.permute.xlu0 %425
        %428 = vset.pattern.permute.xlu0 1
        %429 = vperm.xlu0 %428, %v302
        %v430 = vpop.permute.xlu0 %429
        %432 = vset.pattern.permute.xlu0 1
        %433 = vperm.xlu0 %432, %v303
        %v434 = vpop.permute.xlu0 %433
        %436 = vset.pattern.permute.xlu0 1
        %437 = vperm.xlu0 %436, %v304
        %v438 = vpop.permute.xlu0 %437
        %440 = vset.pattern.permute.xlu0 1
        %441 = vperm.xlu0 %440, %v305
        %v442 = vpop.permute.xlu0 %441
        %444 = vset.pattern.permute.xlu0 1
        %445 = vperm.xlu0 %444, %v306
        %v446 = vpop.permute.xlu0 %445
        %448 = vset.pattern.permute.xlu0 1
        %449 = vperm.xlu0 %448, %v307
        %v450 = vpop.permute.xlu0 %449
        %452 = vset.pattern.permute.xlu0 1
        %453 = vperm.xlu0 %452, %v308
        %v454 = vpop.permute.xlu0 %453
        %456 = vset.pattern.permute.xlu0 1
        %457 = vperm.xlu0 %456, %v309
        %v458 = vpop.permute.xlu0 %457
        %460 = vset.pattern.permute.xlu0 1
        %461 = vperm.xlu0 %460, %v310
        %v462 = vpop.permute.xlu0 %461
        %464 = vset.pattern.permute.xlu0 1
        %465 = vperm.xlu0 %464, %v311
        %v466 = vpop.permute.xlu0 %465
        %468 = vset.pattern.permute.xlu0 1
        %469 = vperm.xlu0 %468, %v312
        %v470 = vpop.permute.xlu0 %469
        %472 = vset.pattern.permute.xlu0 1
        %473 = vperm.xlu0 %472, %v313
        %v474 = vpop.permute.xlu0 %473
        %476 = vset.pattern.permute.xlu0 1
        %477 = vperm.xlu0 %476, %v314
        %v478 = vpop.permute.xlu0 %477
        %v480 = vlaneseq
        %v481 = vshrl.u32 %v480, 7
        %v482 = vsub.s32 1, %v481
        %v483 = vrot.slane %v315, %v482
        %v484 = vmul.f32 %v418, %v483
        %v485 = vmul.f32 %v422, %v483
        %v486 = vmul.f32 %v426, %v483
        %v487 = vmul.f32 %v430, %v483
        %v488 = vmul.f32 %v434, %v483
        %v489 = vmul.f32 %v438, %v483
        %v490 = vmul.f32 %v442, %v483
        %v491 = vmul.f32 %v446, %v483
        %v492 = vmul.f32 %v450, %v483
        %v493 = vmul.f32 %v454, %v483
        %v494 = vmul.f32 %v458, %v483
        %v495 = vmul.f32 %v462, %v483
        %v496 = vmul.f32 %v466, %v483
        %v497 = vmul.f32 %v470, %v483
        %v498 = vmul.f32 %v474, %v483
        %v499 = vmul.f32 %v478, %v483
        %v500 = vadd.f32 %v400, %v484
        %v501 = vadd.f32 %v401, %v485
        %v502 = vadd.f32 %v402, %v486
        %v503 = vadd.f32 %v403, %v487
        %v504 = vadd.f32 %v404, %v488
        %v505 = vadd.f32 %v405, %v489
        %v506 = vadd.f32 %v406, %v490
        %v507 = vadd.f32 %v407, %v491
        %v508 = vadd.f32 %v408, %v492
        %v509 = vadd.f32 %v409, %v493
        %v510 = vadd.f32 %v410, %v494
        %v511 = vadd.f32 %v411, %v495
        %v512 = vadd.f32 %v412, %v496
        %v513 = vadd.f32 %v413, %v497
        %v514 = vadd.f32 %v414, %v498
        %v515 = vadd.f32 %v415, %v499
        %v516 = vld [vmem:[%s2] sm:$0x1]
        %v518 = vlaneseq
        %v519 = vshrl.u32 %v518, 7
        %v520 = vsub.s32 0, %v519
        %v521 = vrot.slane %v516, %v520
        %v523 = vadd.f32 %v500, %v521
        %v524 = vadd.f32 %v501, %v521
        %v525 = vadd.f32 %v502, %v521
        %v526 = vadd.f32 %v503, %v521
        %v527 = vadd.f32 %v504, %v521
        %v528 = vadd.f32 %v505, %v521
        %v529 = vadd.f32 %v506, %v521
        %v530 = vadd.f32 %v507, %v521
        %v531 = vadd.f32 %v508, %v521
        %v532 = vadd.f32 %v509, %v521
        %v533 = vadd.f32 %v510, %v521
        %v534 = vadd.f32 %v511, %v521
        %v535 = vadd.f32 %v512, %v521
        %v536 = vadd.f32 %v513, %v521
        %v537 = vadd.f32 %v514, %v521
        %v538 = vadd.f32 %v515, %v521
        %v539 = vtanh.pop %v523
        %v540 = vtanh.pop %v524
        %v541 = vtanh.pop %v525
        %v542 = vtanh.pop %v526
        %v543 = vtanh.pop %v527
        %v544 = vtanh.pop %v528
        %v545 = vtanh.pop %v529
        %v546 = vtanh.pop %v530
        %v547 = vtanh.pop %v531
        %v548 = vtanh.pop %v532
        %v549 = vtanh.pop %v533
        %v550 = vtanh.pop %v534
        %v551 = vtanh.pop %v535
        %v552 = vtanh.pop %v536
        %v553 = vtanh.pop %v537
        %v554 = vtanh.pop %v538
        %v555 = vld [vmem:[#allocation3] sm:$0xff]
        %v556 = vld [vmem:[#allocation3 + $0x8] sm:$0xff]
        %v557 = vld [vmem:[#allocation3 + $0x10] sm:$0xff]
        %v558 = vld [vmem:[#allocation3 + $0x18] sm:$0xff]
        %v559 = vld [vmem:[#allocation3 + $0x20] sm:$0xff]
        %v560 = vld [vmem:[#allocation3 + $0x28] sm:$0xff]
        %v561 = vld [vmem:[#allocation3 + $0x30] sm:$0xff]
        %v562 = vld [vmem:[#allocation3 + $0x38] sm:$0xff]
        %v563 = vld [vmem:[#allocation3 + $0x40] sm:$0xff]
        %v564 = vld [vmem:[#allocation3 + $0x48] sm:$0xff]
        %v565 = vld [vmem:[#allocation3 + $0x50] sm:$0xff]
        %v566 = vld [vmem:[#allocation3 + $0x58] sm:$0xff]
        %v567 = vld [vmem:[#allocation3 + $0x60] sm:$0xff]
        %v568 = vld [vmem:[#allocation3 + $0x68] sm:$0xff]
        %v569 = vld [vmem:[#allocation3 + $0x70] sm:$0xff]
        %v570 = vld [vmem:[#allocation3 + $0x78] sm:$0xff]
        %v571 = vld [vmem:[%s4] sm:$0x1]
        %v573 = vlaneseq
        %v574 = vshrl.u32 %v573, 7
        %v575 = vsub.s32 0, %v574
        %v576 = vrot.slane %v571, %v575
        %578 = vmatprep.subr.mxu0 0.0
        %579 = vmatpush1.msra.mxu0 %v555
        %580 = vmatprep.subr.mxu0 0.0
        %581 = vmatpush1.msra.mxu0 %v556
        %582 = vmatprep.subr.mxu0 0.0
        %583 = vmatpush1.msra.mxu0 %v557
        %584 = vmatprep.subr.mxu0 0.0
        %585 = vmatpush1.msra.mxu0 %v558
        %586 = vmatprep.subr.mxu0 0.0
        %587 = vmatpush1.msra.mxu0 %v559
        %588 = vmatprep.subr.mxu0 0.0
        %589 = vmatpush1.msra.mxu0 %v560
        %590 = vmatprep.subr.mxu0 0.0
        %591 = vmatpush1.msra.mxu0 %v561
        %592 = vmatprep.subr.mxu0 0.0
        %593 = vmatpush1.msra.mxu0 %v562
        %594 = vmatprep.subr.mxu0 0.0
        %595 = vmatpush1.msra.mxu0 %v563
        %596 = vmatprep.subr.mxu0 0.0
        %597 = vmatpush1.msra.mxu0 %v564
        %598 = vmatprep.subr.mxu0 0.0
        %599 = vmatpush1.msra.mxu0 %v565
        %600 = vmatprep.subr.mxu0 0.0
        %601 = vmatpush1.msra.mxu0 %v566
        %602 = vmatprep.subr.mxu0 0.0
        %603 = vmatpush1.msra.mxu0 %v567
        %604 = vmatprep.subr.mxu0 0.0
        %605 = vmatpush1.msra.mxu0 %v568
        %606 = vmatprep.subr.mxu0 0.0
        %607 = vmatpush1.msra.mxu0 %v569
        %608 = vmatprep.subr.mxu0 0.0
        %609 = vmatpush1.msra.mxu0 %v570
        %610 = vmatprep.subr.mxu0 0.0
        %611 = vmatpush1.msra.mxu0 0.0
        %612 = vmatprep.subr.mxu0 0.0
        %613 = vmatpush1.msra.mxu0 0.0
        %614 = vmatprep.subr.mxu0 0.0
        %615 = vmatpush1.msra.mxu0 0.0
        %616 = vmatprep.subr.mxu0 0.0
        %617 = vmatpush1.msra.mxu0 0.0
        %618 = vmatprep.subr.mxu0 0.0
        %619 = vmatpush1.msra.mxu0 0.0
        %620 = vmatprep.subr.mxu0 0.0
        %621 = vmatpush1.msra.mxu0 0.0
        %622 = vmatprep.subr.mxu0 0.0
        %623 = vmatpush1.msra.mxu0 0.0
        %624 = vmatprep.subr.mxu0 0.0
        %625 = vmatpush1.msra.mxu0 0.0
        %626 = vmatprep.subr.mxu0 0.0
        %627 = vmatpush1.msra.mxu0 0.0
        %628 = vmatprep.subr.mxu0 0.0
        %629 = vmatpush1.msra.mxu0 0.0
        %630 = vmatprep.subr.mxu0 0.0
        %631 = vmatpush1.msra.mxu0 0.0
        %632 = vmatprep.subr.mxu0 0.0
        %633 = vmatpush1.msra.mxu0 0.0
        %634 = vmatprep.subr.mxu0 0.0
        %635 = vmatpush1.msra.mxu0 0.0
        %636 = vmatprep.subr.mxu0 0.0
        %637 = vmatpush1.msra.mxu0 0.0
        %638 = vmatprep.subr.mxu0 0.0
        %639 = vmatpush1.msra.mxu0 0.0
        %640 = vmatprep.subr.mxu0 0.0
        %641 = vmatpush1.msra.mxu0 0.0
        %642 = vmatprep.mubr.f32.mxu0 0.0
        %643 = vmatmul.mubr.f32.gmra.mrb[0].mxu0 %v539
        %v644 = vpop.f32.mrb[0].mxu0
        %v645 = vadd.f32 %v576, %v644
        %v646 = vpop.f32.mrb[0].mxu0
        %647 = vmatprep.mubr.f32.mxu0 0.0
        %648 = vmatmul.mubr.f32.gmra.mrb[0].mxu0 %v540
        %v649 = vpop.f32.mrb[0].mxu0
        %v650 = vadd.f32 %v576, %v649
        %v651 = vpop.f32.mrb[0].mxu0
        %652 = vmatprep.mubr.f32.mxu0 0.0
        %653 = vmatmul.mubr.f32.gmra.mrb[0].mxu0 %v541
        %v654 = vpop.f32.mrb[0].mxu0
        %v655 = vadd.f32 %v576, %v654
        %v656 = vpop.f32.mrb[0].mxu0
        %657 = vmatprep.mubr.f32.mxu0 0.0
        %658 = vmatmul.mubr.f32.gmra.mrb[0].mxu0 %v542
        %v659 = vpop.f32.mrb[0].mxu0
        %v660 = vadd.f32 %v576, %v659
        %v661 = vpop.f32.mrb[0].mxu0
        %662 = vmatprep.mubr.f32.mxu0 0.0
        %663 = vmatmul.mubr.f32.gmra.mrb[0].mxu0 %v543
        %v664 = vpop.f32.mrb[0].mxu0
        %v665 = vadd.f32 %v576, %v664
        %v666 = vpop.f32.mrb[0].mxu0
        %667 = vmatprep.mubr.f32.mxu0 0.0
        %668 = vmatmul.mubr.f32.gmra.mrb[0].mxu0 %v544
        %v669 = vpop.f32.mrb[0].mxu0
        %v670 = vadd.f32 %v576, %v669
        %v671 = vpop.f32.mrb[0].mxu0
        %672 = vmatprep.mubr.f32.mxu0 0.0
        %673 = vmatmul.mubr.f32.gmra.mrb[0].mxu0 %v545
        %v674 = vpop.f32.mrb[0].mxu0
        %v675 = vadd.f32 %v576, %v674
        %v676 = vpop.f32.mrb[0].mxu0
        %677 = vmatprep.mubr.f32.mxu0 0.0
        %678 = vmatmul.mubr.f32.gmra.mrb[0].mxu0 %v546
        %v679 = vpop.f32.mrb[0].mxu0
        %v680 = vadd.f32 %v576, %v679
        %v681 = vpop.f32.mrb[0].mxu0
        %682 = vmatprep.mubr.f32.mxu0 0.0
        %683 = vmatmul.mubr.f32.gmra.mrb[0].mxu0 %v547
        %v684 = vpop.f32.mrb[0].mxu0
        %v685 = vadd.f32 %v576, %v684
        %v686 = vpop.f32.mrb[0].mxu0
        %687 = vmatprep.mubr.f32.mxu0 0.0
        %688 = vmatmul.mubr.f32.gmra.mrb[0].mxu0 %v548
        %v689 = vpop.f32.mrb[0].mxu0
        %v690 = vadd.f32 %v576, %v689
        %v691 = vpop.f32.mrb[0].mxu0
        %692 = vmatprep.mubr.f32.mxu0 0.0
        %693 = vmatmul.mubr.f32.gmra.mrb[0].mxu0 %v549
        %v694 = vpop.f32.mrb[0].mxu0
        %v695 = vadd.f32 %v576, %v694
        %v696 = vpop.f32.mrb[0].mxu0
        %697 = vmatprep.mubr.f32.mxu0 0.0
        %698 = vmatmul.mubr.f32.gmra.mrb[0].mxu0 %v550
        %v699 = vpop.f32.mrb[0].mxu0
        %v700 = vadd.f32 %v576, %v699
        %v701 = vpop.f32.mrb[0].mxu0
        %702 = vmatprep.mubr.f32.mxu0 0.0
        %703 = vmatmul.mubr.f32.gmra.mrb[0].mxu0 %v551
        %v704 = vpop.f32.mrb[0].mxu0
        %v705 = vadd.f32 %v576, %v704
        %v706 = vpop.f32.mrb[0].mxu0
        %707 = vmatprep.mubr.f32.mxu0 0.0
        %708 = vmatmul.mubr.f32.gmra.mrb[0].mxu0 %v552
        %v709 = vpop.f32.mrb[0].mxu0
        %v710 = vadd.f32 %v576, %v709
        %v711 = vpop.f32.mrb[0].mxu0
        %712 = vmatprep.mubr.f32.mxu0 0.0
        %713 = vmatmul.mubr.f32.gmra.mrb[0].mxu0 %v553
        %v714 = vpop.f32.mrb[0].mxu0
        %v715 = vadd.f32 %v576, %v714
        %v716 = vpop.f32.mrb[0].mxu0
        %717 = vmatprep.mubr.f32.mxu0 0.0
        %718 = vmatmul.mubr.f32.gmra.mrb[0].mxu0 %v554
        %v719 = vpop.f32.mrb[0].mxu0
        %v720 = vadd.f32 %v576, %v719
        %v721 = vpop.f32.mrb[0].mxu0
        %722 = vdwg.mxu0
        %v723 = vtanh.pop %v645
        %v724 = vtanh.pop %v650
        %v725 = vtanh.pop %v655
        %v726 = vtanh.pop %v660
        %v727 = vtanh.pop %v665
        %v728 = vtanh.pop %v670
        %v729 = vtanh.pop %v675
        %v730 = vtanh.pop %v680
        %v731 = vtanh.pop %v685
        %v732 = vtanh.pop %v690
        %v733 = vtanh.pop %v695
        %v734 = vtanh.pop %v700
        %v735 = vtanh.pop %v705
        %v736 = vtanh.pop %v710
        %v737 = vtanh.pop %v715
        %v738 = vtanh.pop %v720
        %s739 = scalar_lea.vmem [#allocation3], 128
        %v740 = vld [vmem:[%s739] sm:$0xff]
        %v741 = vld [vmem:[%s739 + $0x8] sm:$0xff]
        %v742 = vld [vmem:[%s739 + $0x10] sm:$0xff]
        %v743 = vld [vmem:[%s739 + $0x18] sm:$0xff]
        %v744 = vld [vmem:[%s739 + $0x20] sm:$0xff]
        %v745 = vld [vmem:[%s739 + $0x28] sm:$0xff]
        %v746 = vld [vmem:[%s739 + $0x30] sm:$0xff]
        %v747 = vld [vmem:[%s739 + $0x38] sm:$0xff]
        %v748 = vld [vmem:[%s739 + $0x40] sm:$0xff]
        %v749 = vld [vmem:[%s739 + $0x48] sm:$0xff]
        %v750 = vld [vmem:[%s739 + $0x50] sm:$0xff]
        %v751 = vld [vmem:[%s739 + $0x58] sm:$0xff]
        %v752 = vld [vmem:[%s739 + $0x60] sm:$0xff]
        %v753 = vld [vmem:[%s739 + $0x68] sm:$0xff]
        %v754 = vld [vmem:[%s739 + $0x70] sm:$0xff]
        %v755 = vld [vmem:[%s739 + $0x78] sm:$0xff]
        %s756 = scalar_lea.vmem %s4, 1
        %v757 = vld [vmem:[%s756] sm:$0x1]
        %v759 = vlaneseq
        %v760 = vshrl.u32 %v759, 7
        %v761 = vsub.s32 0, %v760
        %v762 = vrot.slane %v757, %v761
        %764 = vmatprep.subr.mxu0 0.0
        %765 = vmatpush1.msra.mxu0 %v740
        %766 = vmatprep.subr.mxu0 0.0
        %767 = vmatpush1.msra.mxu0 %v741
        %768 = vmatprep.subr.mxu0 0.0
        %769 = vmatpush1.msra.mxu0 %v742
        %770 = vmatprep.subr.mxu0 0.0
        %771 = vmatpush1.msra.mxu0 %v743
        %772 = vmatprep.subr.mxu0 0.0
        %773 = vmatpush1.msra.mxu0 %v744
        %774 = vmatprep.subr.mxu0 0.0
        %775 = vmatpush1.msra.mxu0 %v745
        %776 = vmatprep.subr.mxu0 0.0
        %777 = vmatpush1.msra.mxu0 %v746
        %778 = vmatprep.subr.mxu0 0.0
        %779 = vmatpush1.msra.mxu0 %v747
        %780 = vmatprep.subr.mxu0 0.0
        %781 = vmatpush1.msra.mxu0 %v748
        %782 = vmatprep.subr.mxu0 0.0
        %783 = vmatpush1.msra.mxu0 %v749
        %784 = vmatprep.subr.mxu0 0.0
        %785 = vmatpush1.msra.mxu0 %v750
        %786 = vmatprep.subr.mxu0 0.0
        %787 = vmatpush1.msra.mxu0 %v751
        %788 = vmatprep.subr.mxu0 0.0
        %789 = vmatpush1.msra.mxu0 %v752
        %790 = vmatprep.subr.mxu0 0.0
        %791 = vmatpush1.msra.mxu0 %v753
        %792 = vmatprep.subr.mxu0 0.0
        %793 = vmatpush1.msra.mxu0 %v754
        %794 = vmatprep.subr.mxu0 0.0
        %795 = vmatpush1.msra.mxu0 %v755
        %796 = vmatprep.subr.mxu0 0.0
        %797 = vmatpush1.msra.mxu0 0.0
        %798 = vmatprep.subr.mxu0 0.0
        %799 = vmatpush1.msra.mxu0 0.0
        %800 = vmatprep.subr.mxu0 0.0
        %801 = vmatpush1.msra.mxu0 0.0
        %802 = vmatprep.subr.mxu0 0.0
        %803 = vmatpush1.msra.mxu0 0.0
        %804 = vmatprep.subr.mxu0 0.0
        %805 = vmatpush1.msra.mxu0 0.0
        %806 = vmatprep.subr.mxu0 0.0
        %807 = vmatpush1.msra.mxu0 0.0
        %808 = vmatprep.subr.mxu0 0.0
        %809 = vmatpush1.msra.mxu0 0.0
        %810 = vmatprep.subr.mxu0 0.0
        %811 = vmatpush1.msra.mxu0 0.0
        %812 = vmatprep.subr.mxu0 0.0
        %813 = vmatpush1.msra.mxu0 0.0
        %814 = vmatprep.subr.mxu0 0.0
        %815 = vmatpush1.msra.mxu0 0.0
        %816 = vmatprep.subr.mxu0 0.0
        %817 = vmatpush1.msra.mxu0 0.0
        %818 = vmatprep.subr.mxu0 0.0
        %819 = vmatpush1.msra.mxu0 0.0
        %820 = vmatprep.subr.mxu0 0.0
        %821 = vmatpush1.msra.mxu0 0.0
        %822 = vmatprep.subr.mxu0 0.0
        %823 = vmatpush1.msra.mxu0 0.0
        %824 = vmatprep.subr.mxu0 0.0
        %825 = vmatpush1.msra.mxu0 0.0
        %826 = vmatprep.subr.mxu0 0.0
        %827 = vmatpush1.msra.mxu0 0.0
        %828 = vmatprep.mubr.f32.mxu0 0.0
        %829 = vmatmul.mubr.f32.gmra.mrb[0].mxu0 %v723
        %v830 = vpop.f32.mrb[0].mxu0
        %v831 = vadd.f32 %v762, %v830
        %v832 = vpop.f32.mrb[0].mxu0
        %833 = vmatprep.mubr.f32.mxu0 0.0
        %834 = vmatmul.mubr.f32.gmra.mrb[0].mxu0 %v724
        %v835 = vpop.f32.mrb[0].mxu0
        %v836 = vadd.f32 %v762, %v835
        %v837 = vpop.f32.mrb[0].mxu0
        %838 = vmatprep.mubr.f32.mxu0 0.0
        %839 = vmatmul.mubr.f32.gmra.mrb[0].mxu0 %v725
        %v840 = vpop.f32.mrb[0].mxu0
        %v841 = vadd.f32 %v762, %v840
        %v842 = vpop.f32.mrb[0].mxu0
        %843 = vmatprep.mubr.f32.mxu0 0.0
        %844 = vmatmul.mubr.f32.gmra.mrb[0].mxu0 %v726
        %v845 = vpop.f32.mrb[0].mxu0
        %v846 = vadd.f32 %v762, %v845
        %v847 = vpop.f32.mrb[0].mxu0
        %848 = vmatprep.mubr.f32.mxu0 0.0
        %849 = vmatmul.mubr.f32.gmra.mrb[0].mxu0 %v727
        %v850 = vpop.f32.mrb[0].mxu0
        %v851 = vadd.f32 %v762, %v850
        %v852 = vpop.f32.mrb[0].mxu0
        %853 = vmatprep.mubr.f32.mxu0 0.0
        %854 = vmatmul.mubr.f32.gmra.mrb[0].mxu0 %v728
        %v855 = vpop.f32.mrb[0].mxu0
        %v856 = vadd.f32 %v762, %v855
        %v857 = vpop.f32.mrb[0].mxu0
        %858 = vmatprep.mubr.f32.mxu0 0.0
        %859 = vmatmul.mubr.f32.gmra.mrb[0].mxu0 %v729
        %v860 = vpop.f32.mrb[0].mxu0
        %v861 = vadd.f32 %v762, %v860
        %v862 = vpop.f32.mrb[0].mxu0
        %863 = vmatprep.mubr.f32.mxu0 0.0
        %864 = vmatmul.mubr.f32.gmra.mrb[0].mxu0 %v730
        %v865 = vpop.f32.mrb[0].mxu0
        %v866 = vadd.f32 %v762, %v865
        %v867 = vpop.f32.mrb[0].mxu0
        %868 = vmatprep.mubr.f32.mxu0 0.0
        %869 = vmatmul.mubr.f32.gmra.mrb[0].mxu0 %v731
        %v870 = vpop.f32.mrb[0].mxu0
        %v871 = vadd.f32 %v762, %v870
        %v872 = vpop.f32.mrb[0].mxu0
        %873 = vmatprep.mubr.f32.mxu0 0.0
        %874 = vmatmul.mubr.f32.gmra.mrb[0].mxu0 %v732
        %v875 = vpop.f32.mrb[0].mxu0
        %v876 = vadd.f32 %v762, %v875
        %v877 = vpop.f32.mrb[0].mxu0
        %878 = vmatprep.mubr.f32.mxu0 0.0
        %879 = vmatmul.mubr.f32.gmra.mrb[0].mxu0 %v733
        %v880 = vpop.f32.mrb[0].mxu0
        %v881 = vadd.f32 %v762, %v880
        %v882 = vpop.f32.mrb[0].mxu0
        %883 = vmatprep.mubr.f32.mxu0 0.0
        %884 = vmatmul.mubr.f32.gmra.mrb[0].mxu0 %v734
        %v885 = vpop.f32.mrb[0].mxu0
        %v886 = vadd.f32 %v762, %v885
        %v887 = vpop.f32.mrb[0].mxu0
        %888 = vmatprep.mubr.f32.mxu0 0.0
        %889 = vmatmul.mubr.f32.gmra.mrb[0].mxu0 %v735
        %v890 = vpop.f32.mrb[0].mxu0
        %v891 = vadd.f32 %v762, %v890
        %v892 = vpop.f32.mrb[0].mxu0
        %893 = vmatprep.mubr.f32.mxu0 0.0
        %894 = vmatmul.mubr.f32.gmra.mrb[0].mxu0 %v736
        %v895 = vpop.f32.mrb[0].mxu0
        %v896 = vadd.f32 %v762, %v895
        %v897 = vpop.f32.mrb[0].mxu0
        %898 = vmatprep.mubr.f32.mxu0 0.0
        %899 = vmatmul.mubr.f32.gmra.mrb[0].mxu0 %v737
        %v900 = vpop.f32.mrb[0].mxu0
        %v901 = vadd.f32 %v762, %v900
        %v902 = vpop.f32.mrb[0].mxu0
        %903 = vmatprep.mubr.f32.mxu0 0.0
        %904 = vmatmul.mubr.f32.gmra.mrb[0].mxu0 %v738
        %v905 = vpop.f32.mrb[0].mxu0
        %v906 = vadd.f32 %v762, %v905
        %v907 = vpop.f32.mrb[0].mxu0
        %908 = vdwg.mxu0
        %v909 = vtanh.pop %v831
        %v910 = vtanh.pop %v836
        %v911 = vtanh.pop %v841
        %v912 = vtanh.pop %v846
        %v913 = vtanh.pop %v851
        %v914 = vtanh.pop %v856
        %v915 = vtanh.pop %v861
        %v916 = vtanh.pop %v866
        %v917 = vtanh.pop %v871
        %v918 = vtanh.pop %v876
        %v919 = vtanh.pop %v881
        %v920 = vtanh.pop %v886
        %v921 = vtanh.pop %v891
        %v922 = vtanh.pop %v896
        %v923 = vtanh.pop %v901
        %v924 = vtanh.pop %v906
        %s925 = scalar_lea.vmem [#allocation3], 256
        %v926 = vld [vmem:[%s925] sm:$0xff]
        %v927 = vld [vmem:[%s925 + $0x8] sm:$0xff]
        %v928 = vld [vmem:[%s925 + $0x10] sm:$0xff]
        %v929 = vld [vmem:[%s925 + $0x18] sm:$0xff]
        %v930 = vld [vmem:[%s925 + $0x20] sm:$0xff]
        %v931 = vld [vmem:[%s925 + $0x28] sm:$0xff]
        %v932 = vld [vmem:[%s925 + $0x30] sm:$0xff]
        %v933 = vld [vmem:[%s925 + $0x38] sm:$0xff]
        %v934 = vld [vmem:[%s925 + $0x40] sm:$0xff]
        %v935 = vld [vmem:[%s925 + $0x48] sm:$0xff]
        %v936 = vld [vmem:[%s925 + $0x50] sm:$0xff]
        %v937 = vld [vmem:[%s925 + $0x58] sm:$0xff]
        %v938 = vld [vmem:[%s925 + $0x60] sm:$0xff]
        %v939 = vld [vmem:[%s925 + $0x68] sm:$0xff]
        %v940 = vld [vmem:[%s925 + $0x70] sm:$0xff]
        %v941 = vld [vmem:[%s925 + $0x78] sm:$0xff]
        %s942 = scalar_lea.vmem %s4, 2
        %v943 = vld [vmem:[%s942] sm:$0x1]
        %v945 = vlaneseq
        %v946 = vshrl.u32 %v945, 7
        %v947 = vsub.s32 0, %v946
        %v948 = vrot.slane %v943, %v947
        %950 = vmatprep.subr.mxu0 0.0
        %951 = vmatpush1.msra.mxu0 %v926
        %952 = vmatprep.subr.mxu0 0.0
        %953 = vmatpush1.msra.mxu0 %v927
        %954 = vmatprep.subr.mxu0 0.0
        %955 = vmatpush1.msra.mxu0 %v928
        %956 = vmatprep.subr.mxu0 0.0
        %957 = vmatpush1.msra.mxu0 %v929
        %958 = vmatprep.subr.mxu0 0.0
        %959 = vmatpush1.msra.mxu0 %v930
        %960 = vmatprep.subr.mxu0 0.0
        %961 = vmatpush1.msra.mxu0 %v931
        %962 = vmatprep.subr.mxu0 0.0
        %963 = vmatpush1.msra.mxu0 %v932
        %964 = vmatprep.subr.mxu0 0.0
        %965 = vmatpush1.msra.mxu0 %v933
        %966 = vmatprep.subr.mxu0 0.0
        %967 = vmatpush1.msra.mxu0 %v934
        %968 = vmatprep.subr.mxu0 0.0
        %969 = vmatpush1.msra.mxu0 %v935
        %970 = vmatprep.subr.mxu0 0.0
        %971 = vmatpush1.msra.mxu0 %v936
        %972 = vmatprep.subr.mxu0 0.0
        %973 = vmatpush1.msra.mxu0 %v937
        %974 = vmatprep.subr.mxu0 0.0
        %975 = vmatpush1.msra.mxu0 %v938
        %976 = vmatprep.subr.mxu0 0.0
        %977 = vmatpush1.msra.mxu0 %v939
        %978 = vmatprep.subr.mxu0 0.0
        %979 = vmatpush1.msra.mxu0 %v940
        %980 = vmatprep.subr.mxu0 0.0
        %981 = vmatpush1.msra.mxu0 %v941
        %982 = vmatprep.subr.mxu0 0.0
        %983 = vmatpush1.msra.mxu0 0.0
        %984 = vmatprep.subr.mxu0 0.0
        %985 = vmatpush1.msra.mxu0 0.0
        %986 = vmatprep.subr.mxu0 0.0
        %987 = vmatpush1.msra.mxu0 0.0
        %988 = vmatprep.subr.mxu0 0.0
        %989 = vmatpush1.msra.mxu0 0.0
        %990 = vmatprep.subr.mxu0 0.0
        %991 = vmatpush1.msra.mxu0 0.0
        %992 = vmatprep.subr.mxu0 0.0
        %993 = vmatpush1.msra.mxu0 0.0
        %994 = vmatprep.subr.mxu0 0.0
        %995 = vmatpush1.msra.mxu0 0.0
        %996 = vmatprep.subr.mxu0 0.0
        %997 = vmatpush1.msra.mxu0 0.0
        %998 = vmatprep.subr.mxu0 0.0
        %999 = vmatpush1.msra.mxu0 0.0
        %1000 = vmatprep.subr.mxu0 0.0
        %1001 = vmatpush1.msra.mxu0 0.0
        %1002 = vmatprep.subr.mxu0 0.0
        %1003 = vmatpush1.msra.mxu0 0.0
        %1004 = vmatprep.subr.mxu0 0.0
        %1005 = vmatpush1.msra.mxu0 0.0
        %1006 = vmatprep.subr.mxu0 0.0
        %1007 = vmatpush1.msra.mxu0 0.0
        %1008 = vmatprep.subr.mxu0 0.0
        %1009 = vmatpush1.msra.mxu0 0.0
        %1010 = vmatprep.subr.mxu0 0.0
        %1011 = vmatpush1.msra.mxu0 0.0
        %1012 = vmatprep.subr.mxu0 0.0
        %1013 = vmatpush1.msra.mxu0 0.0
        %1014 = vmatprep.mubr.f32.mxu0 0.0
        %1015 = vmatmul.mubr.f32.gmra.mrb[0].mxu0 %v909
        %v1016 = vpop.f32.mrb[0].mxu0
        %v1017 = vadd.f32 %v948, %v1016
        %v1018 = vpop.f32.mrb[0].mxu0
        %1019 = vmatprep.mubr.f32.mxu0 0.0
        %1020 = vmatmul.mubr.f32.gmra.mrb[0].mxu0 %v910
        %v1021 = vpop.f32.mrb[0].mxu0
        %v1022 = vadd.f32 %v948, %v1021
        %v1023 = vpop.f32.mrb[0].mxu0
        %1024 = vmatprep.mubr.f32.mxu0 0.0
        %1025 = vmatmul.mubr.f32.gmra.mrb[0].mxu0 %v911
        %v1026 = vpop.f32.mrb[0].mxu0
        %v1027 = vadd.f32 %v948, %v1026
        %v1028 = vpop.f32.mrb[0].mxu0
        %1029 = vmatprep.mubr.f32.mxu0 0.0
        %1030 = vmatmul.mubr.f32.gmra.mrb[0].mxu0 %v912
        %v1031 = vpop.f32.mrb[0].mxu0
        %v1032 = vadd.f32 %v948, %v1031
        %v1033 = vpop.f32.mrb[0].mxu0
        %1034 = vmatprep.mubr.f32.mxu0 0.0
        %1035 = vmatmul.mubr.f32.gmra.mrb[0].mxu0 %v913
        %v1036 = vpop.f32.mrb[0].mxu0
        %v1037 = vadd.f32 %v948, %v1036
        %v1038 = vpop.f32.mrb[0].mxu0
        %1039 = vmatprep.mubr.f32.mxu0 0.0
        %1040 = vmatmul.mubr.f32.gmra.mrb[0].mxu0 %v914
        %v1041 = vpop.f32.mrb[0].mxu0
        %v1042 = vadd.f32 %v948, %v1041
        %v1043 = vpop.f32.mrb[0].mxu0
        %1044 = vmatprep.mubr.f32.mxu0 0.0
        %1045 = vmatmul.mubr.f32.gmra.mrb[0].mxu0 %v915
        %v1046 = vpop.f32.mrb[0].mxu0
        %v1047 = vadd.f32 %v948, %v1046
        %v1048 = vpop.f32.mrb[0].mxu0
        %1049 = vmatprep.mubr.f32.mxu0 0.0
        %1050 = vmatmul.mubr.f32.gmra.mrb[0].mxu0 %v916
        %v1051 = vpop.f32.mrb[0].mxu0
        %v1052 = vadd.f32 %v948, %v1051
        %v1053 = vpop.f32.mrb[0].mxu0
        %1054 = vmatprep.mubr.f32.mxu0 0.0
        %1055 = vmatmul.mubr.f32.gmra.mrb[0].mxu0 %v917
        %v1056 = vpop.f32.mrb[0].mxu0
        %v1057 = vadd.f32 %v948, %v1056
        %v1058 = vpop.f32.mrb[0].mxu0
        %1059 = vmatprep.mubr.f32.mxu0 0.0
        %1060 = vmatmul.mubr.f32.gmra.mrb[0].mxu0 %v918
        %v1061 = vpop.f32.mrb[0].mxu0
        %v1062 = vadd.f32 %v948, %v1061
        %v1063 = vpop.f32.mrb[0].mxu0
        %1064 = vmatprep.mubr.f32.mxu0 0.0
        %1065 = vmatmul.mubr.f32.gmra.mrb[0].mxu0 %v919
        %v1066 = vpop.f32.mrb[0].mxu0
        %v1067 = vadd.f32 %v948, %v1066
        %v1068 = vpop.f32.mrb[0].mxu0
        %1069 = vmatprep.mubr.f32.mxu0 0.0
        %1070 = vmatmul.mubr.f32.gmra.mrb[0].mxu0 %v920
        %v1071 = vpop.f32.mrb[0].mxu0
        %v1072 = vadd.f32 %v948, %v1071
        %v1073 = vpop.f32.mrb[0].mxu0
        %1074 = vmatprep.mubr.f32.mxu0 0.0
        %1075 = vmatmul.mubr.f32.gmra.mrb[0].mxu0 %v921
        %v1076 = vpop.f32.mrb[0].mxu0
        %v1077 = vadd.f32 %v948, %v1076
        %v1078 = vpop.f32.mrb[0].mxu0
        %1079 = vmatprep.mubr.f32.mxu0 0.0
        %1080 = vmatmul.mubr.f32.gmra.mrb[0].mxu0 %v922
        %v1081 = vpop.f32.mrb[0].mxu0
        %v1082 = vadd.f32 %v948, %v1081
        %v1083 = vpop.f32.mrb[0].mxu0
        %1084 = vmatprep.mubr.f32.mxu0 0.0
        %1085 = vmatmul.mubr.f32.gmra.mrb[0].mxu0 %v923
        %v1086 = vpop.f32.mrb[0].mxu0
        %v1087 = vadd.f32 %v948, %v1086
        %v1088 = vpop.f32.mrb[0].mxu0
        %1089 = vmatprep.mubr.f32.mxu0 0.0
        %1090 = vmatmul.mubr.f32.gmra.mrb[0].mxu0 %v924
        %v1091 = vpop.f32.mrb[0].mxu0
        %v1092 = vadd.f32 %v948, %v1091
        %v1093 = vpop.f32.mrb[0].mxu0
        %1094 = vdwg.mxu0
        %v1095 = vtanh.pop %v1017
        %v1096 = vtanh.pop %v1022
        %v1097 = vtanh.pop %v1027
        %v1098 = vtanh.pop %v1032
        %v1099 = vtanh.pop %v1037
        %v1100 = vtanh.pop %v1042
        %v1101 = vtanh.pop %v1047
        %v1102 = vtanh.pop %v1052
        %v1103 = vtanh.pop %v1057
        %v1104 = vtanh.pop %v1062
        %v1105 = vtanh.pop %v1067
        %v1106 = vtanh.pop %v1072
        %v1107 = vtanh.pop %v1077
        %v1108 = vtanh.pop %v1082
        %v1109 = vtanh.pop %v1087
        %v1110 = vtanh.pop %v1092
        %v1111 = vld [vmem:[%s5] sm:$0x1]
        %v1113 = vlaneseq
        %v1114 = vshrl.u32 %v1113, 7
        %v1115 = vsub.s32 0, %v1114
        %v1116 = vrot.slane %v1111, %v1115
        %v1118 = vmul.f32 %v1095, %v1116
        %v1119 = vmul.f32 %v1096, %v1116
        %v1120 = vmul.f32 %v1097, %v1116
        %v1121 = vmul.f32 %v1098, %v1116
        %v1122 = vmul.f32 %v1099, %v1116
        %v1123 = vmul.f32 %v1100, %v1116
        %v1124 = vmul.f32 %v1101, %v1116
        %v1125 = vmul.f32 %v1102, %v1116
        %v1126 = vmul.f32 %v1103, %v1116
        %v1127 = vmul.f32 %v1104, %v1116
        %v1128 = vmul.f32 %v1105, %v1116
        %v1129 = vmul.f32 %v1106, %v1116
        %v1130 = vmul.f32 %v1107, %v1116
        %v1131 = vmul.f32 %v1108, %v1116
        %v1132 = vmul.f32 %v1109, %v1116
        %v1133 = vmul.f32 %v1110, %v1116
        %1134 = vadd.xlane.f32.xlu0 %v1118
        %v1135 = vpop.xlane.xlu0 %1134
        %1136 = vadd.xlane.f32.xlu0 %v1119
        %v1137 = vpop.xlane.xlu0 %1136
        %1138 = vadd.xlane.f32.xlu0 %v1120
        %v1139 = vpop.xlane.xlu0 %1138
        %1140 = vadd.xlane.f32.xlu0 %v1121
        %v1141 = vpop.xlane.xlu0 %1140
        %1142 = vadd.xlane.f32.xlu0 %v1122
        %v1143 = vpop.xlane.xlu0 %1142
        %1144 = vadd.xlane.f32.xlu0 %v1123
        %v1145 = vpop.xlane.xlu0 %1144
        %1146 = vadd.xlane.f32.xlu0 %v1124
        %v1147 = vpop.xlane.xlu0 %1146
        %1148 = vadd.xlane.f32.xlu0 %v1125
        %v1149 = vpop.xlane.xlu0 %1148
        %1150 = vadd.xlane.f32.xlu0 %v1126
        %v1151 = vpop.xlane.xlu0 %1150
        %1152 = vadd.xlane.f32.xlu0 %v1127
        %v1153 = vpop.xlane.xlu0 %1152
        %1154 = vadd.xlane.f32.xlu0 %v1128
        %v1155 = vpop.xlane.xlu0 %1154
        %1156 = vadd.xlane.f32.xlu0 %v1129
        %v1157 = vpop.xlane.xlu0 %1156
        %1158 = vadd.xlane.f32.xlu0 %v1130
        %v1159 = vpop.xlane.xlu0 %1158
        %1160 = vadd.xlane.f32.xlu0 %v1131
        %v1161 = vpop.xlane.xlu0 %1160
        %1162 = vadd.xlane.f32.xlu0 %v1132
        %v1163 = vpop.xlane.xlu0 %1162
        %1164 = vadd.xlane.f32.xlu0 %v1133
        %v1165 = vpop.xlane.xlu0 %1164
        %v1166 = vld [vmem:[#allocation2] sm:$0x1]
        %v1168 = vlaneseq
        %v1169 = vshrl.u32 %v1168, 7
        %v1170 = vsub.s32 0, %v1169
        %v1171 = vrot.slane %v1166, %v1170
        %v1173 = vadd.f32 %v1135, %v1171
        %v1174 = vadd.f32 %v1137, %v1171
        %v1175 = vadd.f32 %v1139, %v1171
        %v1176 = vadd.f32 %v1141, %v1171
        %v1177 = vadd.f32 %v1143, %v1171
        %v1178 = vadd.f32 %v1145, %v1171
        %v1179 = vadd.f32 %v1147, %v1171
        %v1180 = vadd.f32 %v1149, %v1171
        %v1181 = vadd.f32 %v1151, %v1171
        %v1182 = vadd.f32 %v1153, %v1171
        %v1183 = vadd.f32 %v1155, %v1171
        %v1184 = vadd.f32 %v1157, %v1171
        %v1185 = vadd.f32 %v1159, %v1171
        %v1186 = vadd.f32 %v1161, %v1171
        %v1187 = vadd.f32 %v1163, %v1171
        %v1188 = vadd.f32 %v1165, %v1171
        %vm1189 = vcmask 7168
        %1190 = vst.msk [vmem:[%s297] sm:$0xff] %vm1189, %v1173
        %1191 = vst.msk [vmem:[%s297 + $0x8] sm:$0xff] %vm1189, %v1174
        %1192 = vst.msk [vmem:[%s297 + $0x10] sm:$0xff] %vm1189, %v1175
        %1193 = vst.msk [vmem:[%s297 + $0x18] sm:$0xff] %vm1189, %v1176
        %1194 = vst.msk [vmem:[%s297 + $0x20] sm:$0xff] %vm1189, %v1177
        %1195 = vst.msk [vmem:[%s297 + $0x28] sm:$0xff] %vm1189, %v1178
        %1196 = vst.msk [vmem:[%s297 + $0x30] sm:$0xff] %vm1189, %v1179
        %1197 = vst.msk [vmem:[%s297 + $0x38] sm:$0xff] %vm1189, %v1180
        %1198 = vst.msk [vmem:[%s297 + $0x40] sm:$0xff] %vm1189, %v1181
        %1199 = vst.msk [vmem:[%s297 + $0x48] sm:$0xff] %vm1189, %v1182
        %1200 = vst.msk [vmem:[%s297 + $0x50] sm:$0xff] %vm1189, %v1183
        %1201 = vst.msk [vmem:[%s297 + $0x58] sm:$0xff] %vm1189, %v1184
        %1202 = vst.msk [vmem:[%s297 + $0x60] sm:$0xff] %vm1189, %v1185
        %1203 = vst.msk [vmem:[%s297 + $0x68] sm:$0xff] %vm1189, %v1186
        %1204 = vst.msk [vmem:[%s297 + $0x70] sm:$0xff] %vm1189, %v1187
        %1205 = vst.msk [vmem:[%s297 + $0x78] sm:$0xff] %vm1189, %v1188
        %s1206 = smul.u32 16, %s21
        %p1207 = scmp.lt.s32.totalorder %s1206, 31
        %s1208 = scalar_select %p1207, %s1206, 31
        %s1209 = smul.addr %s1208, 8
        %s1210 = scalar_lea.vmem %s7, %s1209
        // Predicated region
        $region53: #{neural_net_forward.1} parent=47 // pred_check
          %p1211 = pneg %p191
        $region54: #{neural_net_forward.1} parent=47 // pred_check_branch
          %1213 = sbr.rel (%p1211) target = $region56
        $region55: #{neural_net_forward.1} parent=47 // pred_region
          %s1214 = smul.u32 16, %s21
        $region56: #{neural_net_forward.1} parent=47 // pred_fallthru
          _
      $region48: #{neural_net_forward.1} parent=5 // pred_fallthru
        _
      %p1215 = scmp.le.s32.totalorder 2, %s16
      // Predicated region
      $region57: #{neural_net_forward.1} parent=5 // pred_check
        %p1216 = pneg %p1215
      $region58: #{neural_net_forward.1} parent=5 // pred_check_branch
        %1218 = sbr.rel (%p1216) target = $region60
      $region59: #{neural_net_forward.1} parent=5 // pred_region
        %s1219 = ssub.s32 %s16, 2
        // Predicated region
        $region61: #{neural_net_forward.1} parent=59 // pred_check
          %p1220 = pneg %p197
        $region62: #{neural_net_forward.1} parent=59 // pred_check_branch
          %1222 = sbr.rel (%p1220) target = $region64
        $region63: #{neural_net_forward.1} parent=59 // pred_region
          %s1223 = smul.u32 16, %s22
          %p1224 = scmp.lt.s32.totalorder %s1223, 31
          %s1225 = scalar_select %p1224, %s1223, 31
          %s1226 = smul.addr %s1225, 8
          %s1227 = scalar_lea.vmem %s7, %s1226
        $region64: #{neural_net_forward.1} parent=59 // pred_fallthru
          _
      $region60: #{neural_net_forward.1} parent=5 // pred_fallthru
        _
    $region6: #{neural_net_forward.1} parent=1 // loop_footer
      %s20 = sadd.s32 1, %s16
    $region7: #{neural_net_forward.1} parent=1 // loop_footer_branch
      %15 = sbr.rel target = $region3
    $region8: #{neural_net_forward.1} parent=1 // loop_exit
      _
    %1228 = vsyncpa [#allocation4], 1
    %s1229 = scalar_lea.sflag [#allocation4], 1
    %1230 = vsyncpa %s1229, 1

</llo_original>
